<compile_context>
chip_gen: v7x
topology: tpu7x:2x2x1
jax: 0.10.0
libtpu: 0.0.40
codegen_flags: <defaults>
</compile_context>

<pallas_src>
import jax
import jax.numpy as jnp
from jax.experimental import pallas as pl
from jax.experimental.pallas import tpu as pltpu

KH = KW = 4
STRIDE = 2
PAD = 1
BN_EPS = 1e-5
LEAKY_SLOPE = 0.2

TILE_COUT = 128                        # lane width / MXU column tile
_PATCH_TILE_BYTES = 4 * 1024 * 1024    # per-buffer patch budget (double-buffered)
_VMEM_LIMIT = 48 * 1024 * 1024         # safe on v7x (64 MiB) and v5e/v6e (128 MiB)


def _round_up(x, m):
    return (x + m - 1) // m * m


def _conv_stats_kernel(p_ref, w_ref, y_ref, sum_ref, sq_ref, sum_acc, sq_acc):
    """Grid = (cout_tiles [parallel], m_tiles [arbitrary]).

    p_ref:   (TILE_M, Kp)        im2col patches (already LeakyReLU'd, zero-padded)
    w_ref:   (Kp, TILE_COUT)     conv weights
    y_ref:   (TILE_M, TILE_COUT) un-normalized conv output tile
    sum_ref, sq_ref: (1, TILE_COUT) per-channel sum / sum-of-squares outputs
    sum_acc, sq_acc: (1, TILE_COUT) VMEM scratch accumulators
    """
    i = pl.program_id(1)  # M-tile index (reduction axis for the BN statistics)

    @pl.when(i == 0)
    def _():
        sum_acc[...] = jnp.zeros_like(sum_acc)
        sq_acc[...] = jnp.zeros_like(sq_acc)

    # Conv as matmul on the MXU (default precision; f32 accumulation).
    y = jnp.dot(p_ref[...], w_ref[...], preferred_element_type=jnp.float32)
    y_ref[...] = y

    # Streaming BatchNorm statistics (padded M-rows are all-zero -> no effect).
    sum_acc[...] += jnp.sum(y, axis=0, keepdims=True)
    sq_acc[...] += jnp.sum(y * y, axis=0, keepdims=True)

    @pl.when(i == pl.num_programs(1) - 1)
    def _():
        sum_ref[...] = sum_acc[...]
        sq_ref[...] = sq_acc[...]


def _bn_affine_kernel(y_ref, scale_ref, shift_ref, out_ref):
    # out = (y - mean) * rsqrt(var + eps) * gamma + beta, pre-folded into
    # per-channel scale/shift by the wrapper.
    out_ref[...] = y_ref[...] * scale_ref[...] + shift_ref[...]


@jax.jit
def downsample_forward(x, weight, bias, gamma, beta):
    """x: (N, Cin, H, W) f32; weight: (Cout, Cin, 4, 4); bias/gamma/beta: (Cout,).

    Note: `bias` is accepted for API parity but intentionally unused -- a
    per-channel conv bias cancels exactly under training-mode BatchNorm.
    """
    del bias
    n, cin, h, w = x.shape
    cout = weight.shape[0]
    h_out = (h + 2 * PAD - KH) // STRIDE + 1
    w_out = (w + 2 * PAD - KW) // STRIDE + 1

    # ---- XLA glue: NHWC, LeakyReLU fused with pad, copy-free im2col ----------
    x_nhwc = jnp.transpose(x, (0, 2, 3, 1)).astype(jnp.float32)
    x_act = jnp.where(x_nhwc > 0, x_nhwc, jnp.float32(LEAKY_SLOPE) * x_nhwc)
    xp = jnp.pad(x_act, ((0, 0), (PAD, PAD), (PAD, PAD), (0, 0)))

    cols = []
    for kh in range(KH):
        for kw in range(KW):
            cols.append(
                xp[:, kh:kh + STRIDE * h_out:STRIDE, kw:kw + STRIDE * w_out:STRIDE, :]
            )  # (N, Hout, Wout, Cin)
    patch = jnp.stack(cols, axis=3)                     # (N, Hout, Wout, KH*KW, Cin)
    m_rows = n * h_out * w_out
    k = cin * KH * KW
    patch = patch.reshape(m_rows, k)                    # K-order = (kh, kw, cin)

    # Weight to (K, Cout) with matching (kh, kw, cin) row order.
    w_mat = jnp.transpose(weight, (2, 3, 1, 0)).reshape(k, cout).astype(jnp.float32)

    # ---- padding to lane / tile boundaries -----------------------------------
    kp = _round_up(k, 128)
    coutp = _round_up(cout, TILE_COUT)

    tile_m = max(8, min(1024, (_PATCH_TILE_BYTES // (kp * 4)) // 8 * 8))
    tile_m = min(tile_m, _round_up(m_rows, 8))
    mp = _round_up(m_rows, tile_m)
    num_m_tiles = mp // tile_m
    num_cout_tiles = coutp // TILE_COUT

    patch_p = jnp.pad(patch, ((0, mp - m_rows), (0, kp - k)))
    w_p = jnp.pad(w_mat, ((0, kp - k), (0, coutp - cout)))

    # ---- kernel 1: conv matmul + streaming BN statistics ----------------------
    y_p, ch_sum, ch_sumsq = pl.pallas_call(
        _conv_stats_kernel,
        out_shape=(
            jax.ShapeDtypeStruct((mp, coutp), jnp.float32),
            jax.ShapeDtypeStruct((1, coutp), jnp.float32),
            jax.ShapeDtypeStruct((1, coutp), jnp.float32),
        ),
        grid_spec=pltpu.PrefetchScalarGridSpec(
            num_scalar_prefetch=0,
            grid=(num_cout_tiles, num_m_tiles),
            in_specs=[
                pl.BlockSpec((tile_m, kp), lambda j, i: (i, 0)),
                pl.BlockSpec((kp, TILE_COUT), lambda j, i: (0, j)),
            ],
            out_specs=(
                pl.BlockSpec((tile_m, TILE_COUT), lambda j, i: (i, j)),
                pl.BlockSpec((1, TILE_COUT), lambda j, i: (0, j)),
                pl.BlockSpec((1, TILE_COUT), lambda j, i: (0, j)),
            ),
            scratch_shapes=[
                pltpu.VMEM((1, TILE_COUT), jnp.float32),
                pltpu.VMEM((1, TILE_COUT), jnp.float32),
            ],
        ),
        compiler_params=pltpu.CompilerParams(
            dimension_semantics=("parallel", "arbitrary"),
            vmem_limit_bytes=_VMEM_LIMIT,
        ),
        cost_estimate=pl.CostEstimate(
            flops=2 * mp * kp * coutp,
            transcendentals=0,
            bytes_accessed=4 * (mp * kp * num_cout_tiles + kp * coutp
                                + mp * coutp + 2 * coutp),
        ),
    )(patch_p, w_p)

    # ---- fold training-mode BN into per-channel affine (tiny XLA math) --------
    m_true = jnp.float32(m_rows)
    mean = ch_sum[0] / m_true
    var = jnp.maximum(ch_sumsq[0] / m_true - mean * mean, 0.0)  # biased variance
    inv_std = jax.lax.rsqrt(var + jnp.float32(BN_EPS))
    gamma_p = jnp.pad(gamma.astype(jnp.float32), (0, coutp - cout))
    beta_p = jnp.pad(beta.astype(jnp.float32), (0, coutp - cout))
    scale = (gamma_p * inv_std).reshape(1, coutp)
    shift = (beta_p - mean * gamma_p * inv_std).reshape(1, coutp)

    # ---- kernel 2: lane-dense normalize (out = y * scale + shift) -------------
    out_p = pl.pallas_call(
        _bn_affine_kernel,
        out_shape=jax.ShapeDtypeStruct((mp, coutp), jnp.float32),
        grid_spec=pltpu.PrefetchScalarGridSpec(
            num_scalar_prefetch=0,
            grid=(num_cout_tiles, num_m_tiles),
            in_specs=[
                pl.BlockSpec((tile_m, TILE_COUT), lambda j, i: (i, j)),
                pl.BlockSpec((1, TILE_COUT), lambda j, i: (0, j)),
                pl.BlockSpec((1, TILE_COUT), lambda j, i: (0, j)),
            ],
            out_specs=pl.BlockSpec((tile_m, TILE_COUT), lambda j, i: (i, j)),
        ),
        compiler_params=pltpu.CompilerParams(
            dimension_semantics=("parallel", "parallel"),
            vmem_limit_bytes=_VMEM_LIMIT,
        ),
        cost_estimate=pl.CostEstimate(
            flops=2 * mp * coutp,
            transcendentals=0,
            bytes_accessed=4 * (2 * mp * coutp + 2 * coutp),
        ),
    )(y_p, scale, shift)

    # Slice off padding, rows are (n, oh, ow) -> back to NCHW.
    out = out_p[:m_rows, :cout].reshape(n, h_out, w_out, cout)
    return jnp.transpose(out, (0, 3, 1, 2))


def _reference_forward(x, weight, bias, gamma, beta):
    """Pure-JAX reference matching PyTorch DownSample.forward (training-mode BN)."""
    xr = jnp.where(x > 0, x, LEAKY_SLOPE * x)
    y = jax.lax.conv_general_dilated(
        xr, weight, window_strides=(STRIDE, STRIDE),
        padding=((PAD, PAD), (PAD, PAD)),
        dimension_numbers=("NCHW", "OIHW", "NCHW"),
        precision=jax.lax.Precision.HIGHEST,
    ) + bias.reshape(1, -1, 1, 1)
    mean = jnp.mean(y, axis=(0, 2, 3), keepdims=True)
    var = jnp.mean((y - mean) ** 2, axis=(0, 2, 3), keepdims=True)
    y_hat = (y - mean) * jax.lax.rsqrt(var + BN_EPS)
    return y_hat * gamma.reshape(1, -1, 1, 1) + beta.reshape(1, -1, 1, 1)


if __name__ == "__main__":
    # Small shapes consistent with the module: NCHW input, in_ch=4 -> out_ch=8.
    N, CIN, H, W = 2, 4, 16, 16
    COUT = 8

    key = jax.random.PRNGKey(0)
    kx, kw_, kb, kg, kbe = jax.random.split(key, 5)

    x = jax.random.normal(kx, (N, CIN, H, W), dtype=jnp.float32)
    fan_in = CIN * KH * KW
    bound = 1.0 / jnp.sqrt(jnp.float32(fan_in))
    weight = jax.random.uniform(kw_, (COUT, CIN, KH, KW), jnp.float32, -bound, bound)
    bias = jax.random.uniform(kb, (COUT,), jnp.float32, -bound, bound)
    gamma = 1.0 + 0.1 * jax.random.normal(kg, (COUT,), jnp.float32)
    beta = 0.1 * jax.random.normal(kbe, (COUT,), jnp.float32)

    out = downsample_forward(x, weight, bias, gamma, beta)
    out = jax.block_until_ready(out)

    ref = jax.block_until_ready(_reference_forward(x, weight, bias, gamma, beta))
    assert out.shape == (N, COUT, H // 2, W // 2), out.shape
    assert jnp.allclose(out, ref, rtol=1e-2, atol=1e-2), float(jnp.max(jnp.abs(out - ref)))

    print("KERNEL_OK")
</pallas_src>

<mosaic_0001>
module attributes {stable_mosaic.version = 11 : i64} {
  func.func @_conv_stats_kernel(%arg0: i32, %arg1: i32, %arg2: memref<128x128xf32, #tpu.memory_space<vmem>>, %arg3: memref<128x128xf32, #tpu.memory_space<vmem>>, %arg4: memref<128x128xf32, #tpu.memory_space<vmem>>, %arg5: memref<1x128xf32, #tpu.memory_space<vmem>>, %arg6: memref<1x128xf32, #tpu.memory_space<vmem>>, %arg7: memref<1x128xf32, #tpu.memory_space<vmem>>, %arg8: memref<1x128xf32, #tpu.memory_space<vmem>>) attributes {dimension_semantics = [#tpu.dimension_semantics<parallel>, #tpu.dimension_semantics<arbitrary>], iteration_bounds = array<i64: 1, 1>, scalar_prefetch = 0 : i64, scratch_operands = 2 : i64, tpu.core_type = #tpu.core_type<tc>, window_params = [{transform_indices = @transform_0, window_bounds = array<i64: 128, 128>}, {transform_indices = @transform_1, window_bounds = array<i64: 128, 128>}, {transform_indices = @transform_2, window_bounds = array<i64: 128, 128>}, {transform_indices = @transform_3, window_bounds = array<i64: 1, 128>}, {transform_indices = @transform_4, window_bounds = array<i64: 1, 128>}]} {
    %c0_i32 = arith.constant 0 : i32
    %0 = arith.cmpi eq, %arg1, %c0_i32 : i32
    %1 = arith.extui %0 : i1 to i32
    %c0_i32_0 = arith.constant 0 : i32
    %2 = arith.cmpi ne, %1, %c0_i32_0 : i32
    scf.if %2 {
      %cst_18 = arith.constant 0.000000e+00 : f32
      %21 = vector.broadcast %cst_18 : f32 to vector<1x128xf32>
      %c0_19 = arith.constant 0 : index
      %c0_20 = arith.constant 0 : index
      %22 = vector.load %arg7[%c0_19, %c0_20] : memref<1x128xf32, #tpu.memory_space<vmem>>, vector<1x128xf32>
      tpu.vector_store %arg7[%c0_19, %c0_20], %21 {strides = array<i32>} : memref<1x128xf32, #tpu.memory_space<vmem>>, vector<1x128xf32>,
      %cst_21 = arith.constant 0.000000e+00 : f32
      %23 = vector.broadcast %cst_21 : f32 to vector<1x128xf32>
      %c0_22 = arith.constant 0 : index
      %c0_23 = arith.constant 0 : index
      %24 = vector.load %arg8[%c0_22, %c0_23] : memref<1x128xf32, #tpu.memory_space<vmem>>, vector<1x128xf32>
      tpu.vector_store %arg8[%c0_22, %c0_23], %23 {strides = array<i32>} : memref<1x128xf32, #tpu.memory_space<vmem>>, vector<1x128xf32>,
    } else {
    }
    %c0 = arith.constant 0 : index
    %c0_1 = arith.constant 0 : index
    %3 = vector.load %arg2[%c0, %c0_1] : memref<128x128xf32, #tpu.memory_space<vmem>>, vector<128x128xf32>
    %c0_2 = arith.constant 0 : index
    %c0_3 = arith.constant 0 : index
    %4 = vector.load %arg3[%c0_2, %c0_3] : memref<128x128xf32, #tpu.memory_space<vmem>>, vector<128x128xf32>
    %cst = arith.constant dense<0.000000e+00> : vector<128x128xf32>
    %5 = tpu.matmul %3, %4, %cst {dimension_numbers = #tpu.dot_dimension_numbers<[1], [0], [0], [1], [0, 0, 1, 1], [], []>} : vector<128x128xf32>, vector<128x128xf32>, vector<128x128xf32> -> vector<128x128xf32>
    %c0_4 = arith.constant 0 : index
    %c0_5 = arith.constant 0 : index
    %6 = vector.load %arg4[%c0_4, %c0_5] : memref<128x128xf32, #tpu.memory_space<vmem>>, vector<128x128xf32>
    tpu.vector_store %arg4[%c0_4, %c0_5], %5 {strides = array<i32>} : memref<128x128xf32, #tpu.memory_space<vmem>>, vector<128x128xf32>,
    %c0_6 = arith.constant 0 : index
    %c0_7 = arith.constant 0 : index
    %7 = vector.load %arg7[%c0_6, %c0_7] : memref<1x128xf32, #tpu.memory_space<vmem>>, vector<1x128xf32>
    %cst_8 = arith.constant dense<0.000000e+00> : vector<128xf32>
    %8 = vector.multi_reduction <add>, %5, %cst_8 [0] : vector<128x128xf32> to vector<128xf32>
    %9 = vector.shape_cast %8 : vector<128xf32> to vector<1x128xf32>
    %10 = arith.addf %7, %9 : vector<1x128xf32>
    %c0_9 = arith.constant 0 : index
    %c0_10 = arith.constant 0 : index
    %11 = vector.load %arg7[%c0_9, %c0_10] : memref<1x128xf32, #tpu.memory_space<vmem>>, vector<1x128xf32>
    tpu.vector_store %arg7[%c0_9, %c0_10], %10 {strides = array<i32>} : memref<1x128xf32, #tpu.memory_space<vmem>>, vector<1x128xf32>,
    %c0_11 = arith.constant 0 : index
    %c0_12 = arith.constant 0 : index
    %12 = vector.load %arg8[%c0_11, %c0_12] : memref<1x128xf32, #tpu.memory_space<vmem>>, vector<1x128xf32>
    %13 = arith.mulf %5, %5 : vector<128x128xf32>
    %cst_13 = arith.constant dense<0.000000e+00> : vector<128xf32>
    %14 = vector.multi_reduction <add>, %13, %cst_13 [0] : vector<128x128xf32> to vector<128xf32>
    %15 = vector.shape_cast %14 : vector<128xf32> to vector<1x128xf32>
    %16 = arith.addf %12, %15 : vector<1x128xf32>
    %c0_14 = arith.constant 0 : index
    %c0_15 = arith.constant 0 : index
    %17 = vector.load %arg8[%c0_14, %c0_15] : memref<1x128xf32, #tpu.memory_space<vmem>>, vector<1x128xf32>
    tpu.vector_store %arg8[%c0_14, %c0_15], %16 {strides = array<i32>} : memref<1x128xf32, #tpu.memory_space<vmem>>, vector<1x128xf32>,
    %c0_i32_16 = arith.constant 0 : i32
    %18 = arith.cmpi eq, %arg1, %c0_i32_16 : i32
    %19 = arith.extui %18 : i1 to i32
    %c0_i32_17 = arith.constant 0 : i32
    %20 = arith.cmpi ne, %19, %c0_i32_17 : i32
    scf.if %20 {
      %c0_18 = arith.constant 0 : index
      %c0_19 = arith.constant 0 : index
      %21 = vector.load %arg7[%c0_18, %c0_19] : memref<1x128xf32, #tpu.memory_space<vmem>>, vector<1x128xf32>
      %c0_20 = arith.constant 0 : index
      %c0_21 = arith.constant 0 : index
      %22 = vector.load %arg5[%c0_20, %c0_21] : memref<1x128xf32, #tpu.memory_space<vmem>>, vector<1x128xf32>
      tpu.vector_store %arg5[%c0_20, %c0_21], %21 {strides = array<i32>} : memref<1x128xf32, #tpu.memory_space<vmem>>, vector<1x128xf32>,
      %c0_22 = arith.constant 0 : index
      %c0_23 = arith.constant 0 : index
      %23 = vector.load %arg8[%c0_22, %c0_23] : memref<1x128xf32, #tpu.memory_space<vmem>>, vector<1x128xf32>
      %c0_24 = arith.constant 0 : index
      %c0_25 = arith.constant 0 : index
      %24 = vector.load %arg6[%c0_24, %c0_25] : memref<1x128xf32, #tpu.memory_space<vmem>>, vector<1x128xf32>
      tpu.vector_store %arg6[%c0_24, %c0_25], %23 {strides = array<i32>} : memref<1x128xf32, #tpu.memory_space<vmem>>, vector<1x128xf32>,
    } else {
    }
    return
  }
  func.func @transform_0(%arg0: i32, %arg1: i32) -> (i32, i32) {
    %c0_i32 = arith.constant 0 : i32
    %c0_i32_0 = arith.constant 0 : i32
    return %arg1, %c0_i32 : i32, i32
  }
  func.func @transform_1(%arg0: i32, %arg1: i32) -> (i32, i32) {
    %c0_i32 = arith.constant 0 : i32
    %c0_i32_0 = arith.constant 0 : i32
    return %c0_i32, %arg0 : i32, i32
  }
  func.func @transform_2(%arg0: i32, %arg1: i32) -> (i32, i32) {
    %c0_i32 = arith.constant 0 : i32
    return %arg1, %arg0 : i32, i32
  }
  func.func @transform_3(%arg0: i32, %arg1: i32) -> (i32, i32) {
    %c0_i32 = arith.constant 0 : i32
    %c0_i32_0 = arith.constant 0 : i32
    return %c0_i32, %arg0 : i32, i32
  }
  func.func @transform_4(%arg0: i32, %arg1: i32) -> (i32, i32) {
    %c0_i32 = arith.constant 0 : i32
    %c0_i32_0 = arith.constant 0 : i32
    return %c0_i32, %arg0 : i32, i32
  }
}

module attributes {stable_mosaic.version = 11 : i64} {
  func.func @_bn_affine_kernel(%arg0: i32, %arg1: i32, %arg2: memref<128x128xf32, #tpu.memory_space<vmem>>, %arg3: memref<1x128xf32, #tpu.memory_space<vmem>>, %arg4: memref<1x128xf32, #tpu.memory_space<vmem>>, %arg5: memref<128x128xf32, #tpu.memory_space<vmem>>) attributes {dimension_semantics = [#tpu.dimension_semantics<parallel>, #tpu.dimension_semantics<parallel>], iteration_bounds = array<i64: 1, 1>, scalar_prefetch = 0 : i64, scratch_operands = 0 : i64, tpu.core_type = #tpu.core_type<tc>, window_params = [{transform_indices = @transform_0, window_bounds = array<i64: 128, 128>}, {transform_indices = @transform_1, window_bounds = array<i64: 1, 128>}, {transform_indices = @transform_2, window_bounds = array<i64: 1, 128>}, {transform_indices = @transform_3, window_bounds = array<i64: 128, 128>}]} {
    %c0 = arith.constant 0 : index
    %c0_0 = arith.constant 0 : index
    %0 = vector.load %arg2[%c0, %c0_0] : memref<128x128xf32, #tpu.memory_space<vmem>>, vector<128x128xf32>
    %c0_1 = arith.constant 0 : index
    %c0_2 = arith.constant 0 : index
    %1 = vector.load %arg3[%c0_1, %c0_2] : memref<1x128xf32, #tpu.memory_space<vmem>>, vector<1x128xf32>
    %2 = vector.broadcast %1 : vector<1x128xf32> to vector<128x128xf32>
    %3 = arith.mulf %0, %2 : vector<128x128xf32>
    %c0_3 = arith.constant 0 : index
    %c0_4 = arith.constant 0 : index
    %4 = vector.load %arg4[%c0_3, %c0_4] : memref<1x128xf32, #tpu.memory_space<vmem>>, vector<1x128xf32>
    %5 = vector.broadcast %4 : vector<1x128xf32> to vector<128x128xf32>
    %6 = arith.addf %3, %5 : vector<128x128xf32>
    %c0_5 = arith.constant 0 : index
    %c0_6 = arith.constant 0 : index
    %7 = vector.load %arg5[%c0_5, %c0_6] : memref<128x128xf32, #tpu.memory_space<vmem>>, vector<128x128xf32>
    tpu.vector_store %arg5[%c0_5, %c0_6], %6 {strides = array<i32>} : memref<128x128xf32, #tpu.memory_space<vmem>>, vector<128x128xf32>,
    return
  }
  func.func @transform_0(%arg0: i32, %arg1: i32) -> (i32, i32) {
    %c0_i32 = arith.constant 0 : i32
    return %arg1, %arg0 : i32, i32
  }
  func.func @transform_1(%arg0: i32, %arg1: i32) -> (i32, i32) {
    %c0_i32 = arith.constant 0 : i32
    %c0_i32_0 = arith.constant 0 : i32
    return %c0_i32, %arg0 : i32, i32
  }
  func.func @transform_2(%arg0: i32, %arg1: i32) -> (i32, i32) {
    %c0_i32 = arith.constant 0 : i32
    %c0_i32_0 = arith.constant 0 : i32
    return %c0_i32, %arg0 : i32, i32
  }
  func.func @transform_3(%arg0: i32, %arg1: i32) -> (i32, i32) {
    %c0_i32 = arith.constant 0 : i32
    return %arg1, %arg0 : i32, i32
  }
}

</mosaic_0001>

<llo_original>
// kernel: downsample_forward.3
$region0: #{downsample_forward.3}
  #allocation0 [shape = 'u32[]', space=smem, size = 0x4, offset = 0x4, fixed_abs, tag = 'smem constant byte address 0x4 - core index']
  #allocation1 [shape = 'u32[144,128]{1,0:T(1,128)}', space=vmem, size = 0x12000, scoped, tag = 'internal scratch']
  %s0 = inlined_call_operand.vmem [shape: f32[128,128], index: 0, kind: input, shape index: {}]
  %s1 = inlined_call_operand.vmem [shape: f32[1,128], index: 1, kind: input, shape index: {}]
  %s2 = inlined_call_operand.vmem [shape: f32[1,128], index: 2, kind: input, shape index: {}]
  %s3 = inlined_call_operand.vmem [shape: f32[128,128], index: 3, kind: output, shape index: {}]
  %s4 = sld [smem:[#allocation0]]
  $region22: #{downsample_forward.3} parent=0
    _
  %s6 = ssub.s32 1, %s4
  %s7 = scalar_select 0, %s6, %s4
  // Predicated region
  $region2: #{downsample_forward.3} parent=0 // pred_check
    _
  $region3: #{downsample_forward.3} parent=0 // pred_check_branch
    %9 = sbr.rel (0) target = $region5
  $region4: #{downsample_forward.3} parent=0 // pred_region
    _
  $region5: #{downsample_forward.3} parent=0 // pred_fallthru
    _
  // Predicated region
  $region6: #{downsample_forward.3} parent=0 // pred_check
    _
  $region7: #{downsample_forward.3} parent=0 // pred_check_branch
    %11 = sbr.rel (0) target = $region9
  $region8: #{downsample_forward.3} parent=0 // pred_region
    _
  $region9: #{downsample_forward.3} parent=0 // pred_fallthru
    _
  // Predicated region
  $region10: #{downsample_forward.3} parent=0 // pred_check
    _
  $region11: #{downsample_forward.3} parent=0 // pred_check_branch
    %13 = sbr.rel (0) target = $region13
  $region12: #{downsample_forward.3} parent=0 // pred_region
    _
  $region13: #{downsample_forward.3} parent=0 // pred_fallthru
    _
  %v14 = vld [vmem:[%s0] sm:$0xff]
  %v15 = vld [vmem:[%s0 + $0x8] sm:$0xff]
  %v16 = vld [vmem:[%s0 + $0x10] sm:$0xff]
  %v17 = vld [vmem:[%s0 + $0x18] sm:$0xff]
  %v18 = vld [vmem:[%s0 + $0x20] sm:$0xff]
  %v19 = vld [vmem:[%s0 + $0x28] sm:$0xff]
  %v20 = vld [vmem:[%s0 + $0x30] sm:$0xff]
  %v21 = vld [vmem:[%s0 + $0x38] sm:$0xff]
  %v22 = vld [vmem:[%s0 + $0x40] sm:$0xff]
  %v23 = vld [vmem:[%s0 + $0x48] sm:$0xff]
  %v24 = vld [vmem:[%s0 + $0x50] sm:$0xff]
  %v25 = vld [vmem:[%s0 + $0x58] sm:$0xff]
  %v26 = vld [vmem:[%s0 + $0x60] sm:$0xff]
  %v27 = vld [vmem:[%s0 + $0x68] sm:$0xff]
  %v28 = vld [vmem:[%s0 + $0x70] sm:$0xff]
  %v29 = vld [vmem:[%s0 + $0x78] sm:$0xff]
  %v30 = vld [vmem:[%s1] sm:$0x1]
  %v32 = vlaneseq
  %v33 = vshrl.u32 %v32, 7
  %v34 = vsub.s32 0, %v33
  %v35 = vrot.slane %v30, %v34
  %v37 = vmul.f32 %v14, %v35
  %v38 = vmul.f32 %v15, %v35
  %v39 = vmul.f32 %v16, %v35
  %v40 = vmul.f32 %v17, %v35
  %v41 = vmul.f32 %v18, %v35
  %v42 = vmul.f32 %v19, %v35
  %v43 = vmul.f32 %v20, %v35
  %v44 = vmul.f32 %v21, %v35
  %v45 = vmul.f32 %v22, %v35
  %v46 = vmul.f32 %v23, %v35
  %v47 = vmul.f32 %v24, %v35
  %v48 = vmul.f32 %v25, %v35
  %v49 = vmul.f32 %v26, %v35
  %v50 = vmul.f32 %v27, %v35
  %v51 = vmul.f32 %v28, %v35
  %v52 = vmul.f32 %v29, %v35
  %v53 = vld [vmem:[%s2] sm:$0x1]
  %v55 = vlaneseq
  %v56 = vshrl.u32 %v55, 7
  %v57 = vsub.s32 0, %v56
  %v58 = vrot.slane %v53, %v57
  %v60 = vadd.f32 %v37, %v58
  %v61 = vadd.f32 %v38, %v58
  %v62 = vadd.f32 %v39, %v58
  %v63 = vadd.f32 %v40, %v58
  %v64 = vadd.f32 %v41, %v58
  %v65 = vadd.f32 %v42, %v58
  %v66 = vadd.f32 %v43, %v58
  %v67 = vadd.f32 %v44, %v58
  %v68 = vadd.f32 %v45, %v58
  %v69 = vadd.f32 %v46, %v58
  %v70 = vadd.f32 %v47, %v58
  %v71 = vadd.f32 %v48, %v58
  %v72 = vadd.f32 %v49, %v58
  %v73 = vadd.f32 %v50, %v58
  %v74 = vadd.f32 %v51, %v58
  %v75 = vadd.f32 %v52, %v58
  %76 = vst [vmem:[%s3] sm:$0xff] %v60
  %77 = vst [vmem:[%s3 + $0x8] sm:$0xff] %v61
  %78 = vst [vmem:[%s3 + $0x10] sm:$0xff] %v62
  %79 = vst [vmem:[%s3 + $0x18] sm:$0xff] %v63
  %80 = vst [vmem:[%s3 + $0x20] sm:$0xff] %v64
  %81 = vst [vmem:[%s3 + $0x28] sm:$0xff] %v65
  %82 = vst [vmem:[%s3 + $0x30] sm:$0xff] %v66
  %83 = vst [vmem:[%s3 + $0x38] sm:$0xff] %v67
  %84 = vst [vmem:[%s3 + $0x40] sm:$0xff] %v68
  %85 = vst [vmem:[%s3 + $0x48] sm:$0xff] %v69
  %86 = vst [vmem:[%s3 + $0x50] sm:$0xff] %v70
  %87 = vst [vmem:[%s3 + $0x58] sm:$0xff] %v71
  %88 = vst [vmem:[%s3 + $0x60] sm:$0xff] %v72
  %89 = vst [vmem:[%s3 + $0x68] sm:$0xff] %v73
  %90 = vst [vmem:[%s3 + $0x70] sm:$0xff] %v74
  %91 = vst [vmem:[%s3 + $0x78] sm:$0xff] %v75
  // Predicated region
  $region14: #{downsample_forward.3} parent=0 // pred_check
    _
  $region15: #{downsample_forward.3} parent=0 // pred_check_branch
    %93 = sbr.rel (0) target = $region17
  $region16: #{downsample_forward.3} parent=0 // pred_region
    _
  $region17: #{downsample_forward.3} parent=0 // pred_fallthru
    _
  // Predicated region
  $region18: #{downsample_forward.3} parent=0 // pred_check
    _
  $region19: #{downsample_forward.3} parent=0 // pred_check_branch
    %95 = sbr.rel (0) target = $region21
  $region20: #{downsample_forward.3} parent=0 // pred_region
    _
  $region21: #{downsample_forward.3} parent=0 // pred_fallthru
    _

// kernel: downsample_forward.2
$region0: #{downsample_forward.2}
  #allocation0 [shape = 'u32[]', space=smem, size = 0x4, offset = 0x4, fixed_abs, tag = 'smem constant byte address 0x4 - core index']
  #allocation1 [shape = 'u32[144,128]{1,0:T(1,128)}', space=vmem, size = 0x12000, scoped, tag = 'internal scratch']
  #allocation2 [shape = 'f32[1,128]{1,0:T(1,128)}', space=vmem, size = 0x200, scoped, tag = 'scratch operand']
  #allocation3 [shape = 'f32[1,128]{1,0:T(1,128)}', space=vmem, size = 0x200, scoped, tag = 'scratch operand']
  %s0 = inlined_call_operand.vmem [shape: f32[128,128], index: 0, kind: input, shape index: {}]
  %s1 = inlined_call_operand.vmem [shape: f32[128,128], index: 1, kind: input, shape index: {}]
  %s2 = inlined_call_operand.vmem [shape: f32[128,128], index: 2, kind: output, shape index: {0}]
  %s3 = inlined_call_operand.vmem [shape: f32[1,128], index: 3, kind: output, shape index: {1}]
  %s4 = inlined_call_operand.vmem [shape: f32[1,128], index: 4, kind: output, shape index: {2}]
  %5 = xla_tuple %s2, %s3, %s4
  %s6 = sld [smem:[#allocation0]]
  $region42: #{downsample_forward.2} parent=0
    _
  %s8 = ssub.s32 1, %s6
  %s9 = scalar_select 0, %s8, %s6
  // Predicated region
  $region2: #{downsample_forward.2} parent=0 // pred_check
    _
  $region3: #{downsample_forward.2} parent=0 // pred_check_branch
    %11 = sbr.rel (0) target = $region5
  $region4: #{downsample_forward.2} parent=0 // pred_region
    _
  $region5: #{downsample_forward.2} parent=0 // pred_fallthru
    _
  // Predicated region
  $region6: #{downsample_forward.2} parent=0 // pred_check
    _
  $region7: #{downsample_forward.2} parent=0 // pred_check_branch
    %13 = sbr.rel (0) target = $region9
  $region8: #{downsample_forward.2} parent=0 // pred_region
    _
  $region9: #{downsample_forward.2} parent=0 // pred_fallthru
    _
  %p14 = scmp.eq.s32.totalorder 0, 0
  // Predicated region
  $region10: #{downsample_forward.2} parent=0 // pred_check
    %p15 = pneg %p14
  $region11: #{downsample_forward.2} parent=0 // pred_check_branch
    %17 = sbr.rel (%p15) target = $region13
  $region12: #{downsample_forward.2} parent=0 // pred_region
    %18 = vst [vmem:[#allocation2] sm:$0x1] 0.0
    %19 = vst [vmem:[#allocation3] sm:$0x1] 0.0
  $region13: #{downsample_forward.2} parent=0 // pred_fallthru
    _
  %v20 = vld [vmem:[%s0] sm:$0xff]
  %v21 = vld [vmem:[%s0 + $0x8] sm:$0xff]
  %v22 = vld [vmem:[%s0 + $0x10] sm:$0xff]
  %v23 = vld [vmem:[%s0 + $0x18] sm:$0xff]
  %v24 = vld [vmem:[%s0 + $0x20] sm:$0xff]
  %v25 = vld [vmem:[%s0 + $0x28] sm:$0xff]
  %v26 = vld [vmem:[%s0 + $0x30] sm:$0xff]
  %v27 = vld [vmem:[%s0 + $0x38] sm:$0xff]
  %v28 = vld [vmem:[%s0 + $0x40] sm:$0xff]
  %v29 = vld [vmem:[%s0 + $0x48] sm:$0xff]
  %v30 = vld [vmem:[%s0 + $0x50] sm:$0xff]
  %v31 = vld [vmem:[%s0 + $0x58] sm:$0xff]
  %v32 = vld [vmem:[%s0 + $0x60] sm:$0xff]
  %v33 = vld [vmem:[%s0 + $0x68] sm:$0xff]
  %v34 = vld [vmem:[%s0 + $0x70] sm:$0xff]
  %v35 = vld [vmem:[%s0 + $0x78] sm:$0xff]
  %v36 = vld [vmem:[%s1] sm:$0xff]
  %v37 = vld [vmem:[%s1 + $0x8] sm:$0xff]
  %v38 = vld [vmem:[%s1 + $0x10] sm:$0xff]
  %v39 = vld [vmem:[%s1 + $0x18] sm:$0xff]
  %v40 = vld [vmem:[%s1 + $0x20] sm:$0xff]
  %v41 = vld [vmem:[%s1 + $0x28] sm:$0xff]
  %v42 = vld [vmem:[%s1 + $0x30] sm:$0xff]
  %v43 = vld [vmem:[%s1 + $0x38] sm:$0xff]
  %v44 = vld [vmem:[%s1 + $0x40] sm:$0xff]
  %v45 = vld [vmem:[%s1 + $0x48] sm:$0xff]
  %v46 = vld [vmem:[%s1 + $0x50] sm:$0xff]
  %v47 = vld [vmem:[%s1 + $0x58] sm:$0xff]
  %v48 = vld [vmem:[%s1 + $0x60] sm:$0xff]
  %v49 = vld [vmem:[%s1 + $0x68] sm:$0xff]
  %v50 = vld [vmem:[%s1 + $0x70] sm:$0xff]
  %v51 = vld [vmem:[%s1 + $0x78] sm:$0xff]
  %52 = vmatprep.subr.mxu0 0.0
  %53 = vmatpush1.msra.mxu0 %v36
  %54 = vmatprep.subr.mxu0 0.0
  %55 = vmatpush1.msra.mxu0 %v37
  %56 = vmatprep.subr.mxu0 0.0
  %57 = vmatpush1.msra.mxu0 %v38
  %58 = vmatprep.subr.mxu0 0.0
  %59 = vmatpush1.msra.mxu0 %v39
  %60 = vmatprep.subr.mxu0 0.0
  %61 = vmatpush1.msra.mxu0 %v40
  %62 = vmatprep.subr.mxu0 0.0
  %63 = vmatpush1.msra.mxu0 %v41
  %64 = vmatprep.subr.mxu0 0.0
  %65 = vmatpush1.msra.mxu0 %v42
  %66 = vmatprep.subr.mxu0 0.0
  %67 = vmatpush1.msra.mxu0 %v43
  %68 = vmatprep.subr.mxu0 0.0
  %69 = vmatpush1.msra.mxu0 %v44
  %70 = vmatprep.subr.mxu0 0.0
  %71 = vmatpush1.msra.mxu0 %v45
  %72 = vmatprep.subr.mxu0 0.0
  %73 = vmatpush1.msra.mxu0 %v46
  %74 = vmatprep.subr.mxu0 0.0
  %75 = vmatpush1.msra.mxu0 %v47
  %76 = vmatprep.subr.mxu0 0.0
  %77 = vmatpush1.msra.mxu0 %v48
  %78 = vmatprep.subr.mxu0 0.0
  %79 = vmatpush1.msra.mxu0 %v49
  %80 = vmatprep.subr.mxu0 0.0
  %81 = vmatpush1.msra.mxu0 %v50
  %82 = vmatprep.subr.mxu0 0.0
  %83 = vmatpush1.msra.mxu0 %v51
  %84 = vmatprep.subr.mxu0 0.0
  %85 = vmatpush1.msra.mxu0 0.0
  %86 = vmatprep.subr.mxu0 0.0
  %87 = vmatpush1.msra.mxu0 0.0
  %88 = vmatprep.subr.mxu0 0.0
  %89 = vmatpush1.msra.mxu0 0.0
  %90 = vmatprep.subr.mxu0 0.0
  %91 = vmatpush1.msra.mxu0 0.0
  %92 = vmatprep.subr.mxu0 0.0
  %93 = vmatpush1.msra.mxu0 0.0
  %94 = vmatprep.subr.mxu0 0.0
  %95 = vmatpush1.msra.mxu0 0.0
  %96 = vmatprep.subr.mxu0 0.0
  %97 = vmatpush1.msra.mxu0 0.0
  %98 = vmatprep.subr.mxu0 0.0
  %99 = vmatpush1.msra.mxu0 0.0
  %100 = vmatprep.subr.mxu0 0.0
  %101 = vmatpush1.msra.mxu0 0.0
  %102 = vmatprep.subr.mxu0 0.0
  %103 = vmatpush1.msra.mxu0 0.0
  %104 = vmatprep.subr.mxu0 0.0
  %105 = vmatpush1.msra.mxu0 0.0
  %106 = vmatprep.subr.mxu0 0.0
  %107 = vmatpush1.msra.mxu0 0.0
  %108 = vmatprep.subr.mxu0 0.0
  %109 = vmatpush1.msra.mxu0 0.0
  %110 = vmatprep.subr.mxu0 0.0
  %111 = vmatpush1.msra.mxu0 0.0
  %112 = vmatprep.subr.mxu0 0.0
  %113 = vmatpush1.msra.mxu0 0.0
  %114 = vmatprep.subr.mxu0 0.0
  %115 = vmatpush1.msra.mxu0 0.0
  %116 = vmatprep.mubr.f32.mxu0 0.0
  %117 = vmatmul.mubr.f32.gmra.mrb[0].mxu0 %v20
  %v118 = vpop.f32.mrb[0].mxu0
  %v119 = vadd.f32 0.0, %v118
  %v120 = vpop.f32.mrb[0].mxu0
  %121 = vmatprep.mubr.f32.mxu0 0.0
  %122 = vmatmul.mubr.f32.gmra.mrb[0].mxu0 %v21
  %v123 = vpop.f32.mrb[0].mxu0
  %v124 = vadd.f32 0.0, %v123
  %v125 = vpop.f32.mrb[0].mxu0
  %126 = vmatprep.mubr.f32.mxu0 0.0
  %127 = vmatmul.mubr.f32.gmra.mrb[0].mxu0 %v22
  %v128 = vpop.f32.mrb[0].mxu0
  %v129 = vadd.f32 0.0, %v128
  %v130 = vpop.f32.mrb[0].mxu0
  %131 = vmatprep.mubr.f32.mxu0 0.0
  %132 = vmatmul.mubr.f32.gmra.mrb[0].mxu0 %v23
  %v133 = vpop.f32.mrb[0].mxu0
  %v134 = vadd.f32 0.0, %v133
  %v135 = vpop.f32.mrb[0].mxu0
  %136 = vmatprep.mubr.f32.mxu0 0.0
  %137 = vmatmul.mubr.f32.gmra.mrb[0].mxu0 %v24
  %v138 = vpop.f32.mrb[0].mxu0
  %v139 = vadd.f32 0.0, %v138
  %v140 = vpop.f32.mrb[0].mxu0
  %141 = vmatprep.mubr.f32.mxu0 0.0
  %142 = vmatmul.mubr.f32.gmra.mrb[0].mxu0 %v25
  %v143 = vpop.f32.mrb[0].mxu0
  %v144 = vadd.f32 0.0, %v143
  %v145 = vpop.f32.mrb[0].mxu0
  %146 = vmatprep.mubr.f32.mxu0 0.0
  %147 = vmatmul.mubr.f32.gmra.mrb[0].mxu0 %v26
  %v148 = vpop.f32.mrb[0].mxu0
  %v149 = vadd.f32 0.0, %v148
  %v150 = vpop.f32.mrb[0].mxu0
  %151 = vmatprep.mubr.f32.mxu0 0.0
  %152 = vmatmul.mubr.f32.gmra.mrb[0].mxu0 %v27
  %v153 = vpop.f32.mrb[0].mxu0
  %v154 = vadd.f32 0.0, %v153
  %v155 = vpop.f32.mrb[0].mxu0
  %156 = vmatprep.mubr.f32.mxu0 0.0
  %157 = vmatmul.mubr.f32.gmra.mrb[0].mxu0 %v28
  %v158 = vpop.f32.mrb[0].mxu0
  %v159 = vadd.f32 0.0, %v158
  %v160 = vpop.f32.mrb[0].mxu0
  %161 = vmatprep.mubr.f32.mxu0 0.0
  %162 = vmatmul.mubr.f32.gmra.mrb[0].mxu0 %v29
  %v163 = vpop.f32.mrb[0].mxu0
  %v164 = vadd.f32 0.0, %v163
  %v165 = vpop.f32.mrb[0].mxu0
  %166 = vmatprep.mubr.f32.mxu0 0.0
  %167 = vmatmul.mubr.f32.gmra.mrb[0].mxu0 %v30
  %v168 = vpop.f32.mrb[0].mxu0
  %v169 = vadd.f32 0.0, %v168
  %v170 = vpop.f32.mrb[0].mxu0
  %171 = vmatprep.mubr.f32.mxu0 0.0
  %172 = vmatmul.mubr.f32.gmra.mrb[0].mxu0 %v31
  %v173 = vpop.f32.mrb[0].mxu0
  %v174 = vadd.f32 0.0, %v173
  %v175 = vpop.f32.mrb[0].mxu0
  %176 = vmatprep.mubr.f32.mxu0 0.0
  %177 = vmatmul.mubr.f32.gmra.mrb[0].mxu0 %v32
  %v178 = vpop.f32.mrb[0].mxu0
  %v179 = vadd.f32 0.0, %v178
  %v180 = vpop.f32.mrb[0].mxu0
  %181 = vmatprep.mubr.f32.mxu0 0.0
  %182 = vmatmul.mubr.f32.gmra.mrb[0].mxu0 %v33
  %v183 = vpop.f32.mrb[0].mxu0
  %v184 = vadd.f32 0.0, %v183
  %v185 = vpop.f32.mrb[0].mxu0
  %186 = vmatprep.mubr.f32.mxu0 0.0
  %187 = vmatmul.mubr.f32.gmra.mrb[0].mxu0 %v34
  %v188 = vpop.f32.mrb[0].mxu0
  %v189 = vadd.f32 0.0, %v188
  %v190 = vpop.f32.mrb[0].mxu0
  %191 = vmatprep.mubr.f32.mxu0 0.0
  %192 = vmatmul.mubr.f32.gmra.mrb[0].mxu0 %v35
  %v193 = vpop.f32.mrb[0].mxu0
  %v194 = vadd.f32 0.0, %v193
  %v195 = vpop.f32.mrb[0].mxu0
  %196 = vdwg.mxu0
  %197 = vst [vmem:[%s2] sm:$0xff] %v119
  %198 = vst [vmem:[%s2 + $0x8] sm:$0xff] %v124
  %199 = vst [vmem:[%s2 + $0x10] sm:$0xff] %v129
  %200 = vst [vmem:[%s2 + $0x18] sm:$0xff] %v134
  %201 = vst [vmem:[%s2 + $0x20] sm:$0xff] %v139
  %202 = vst [vmem:[%s2 + $0x28] sm:$0xff] %v144
  %203 = vst [vmem:[%s2 + $0x30] sm:$0xff] %v149
  %204 = vst [vmem:[%s2 + $0x38] sm:$0xff] %v154
  %205 = vst [vmem:[%s2 + $0x40] sm:$0xff] %v159
  %206 = vst [vmem:[%s2 + $0x48] sm:$0xff] %v164
  %207 = vst [vmem:[%s2 + $0x50] sm:$0xff] %v169
  %208 = vst [vmem:[%s2 + $0x58] sm:$0xff] %v174
  %209 = vst [vmem:[%s2 + $0x60] sm:$0xff] %v179
  %210 = vst [vmem:[%s2 + $0x68] sm:$0xff] %v184
  %211 = vst [vmem:[%s2 + $0x70] sm:$0xff] %v189
  %212 = vst [vmem:[%s2 + $0x78] sm:$0xff] %v194
  %v213 = vld [vmem:[#allocation2] sm:$0x1]
  %v214 = vadd.f32 %v119, %v124
  %v215 = vadd.f32 %v214, %v129
  %v216 = vadd.f32 %v215, %v134
  %v217 = vadd.f32 %v216, %v139
  %v218 = vadd.f32 %v217, %v144
  %v219 = vadd.f32 %v218, %v149
  %v220 = vadd.f32 %v219, %v154
  %v221 = vadd.f32 %v220, %v159
  %v222 = vadd.f32 %v221, %v164
  %v223 = vadd.f32 %v222, %v169
  %v224 = vadd.f32 %v223, %v174
  %v225 = vadd.f32 %v224, %v179
  %v226 = vadd.f32 %v225, %v184
  %v227 = vadd.f32 %v226, %v189
  %v228 = vadd.f32 %v227, %v194
  %v229 = vrot.slane %v228, 4
  %v230 = vadd.f32 %v228, %v229
  %v231 = vrot.slane %v230, 2
  %v232 = vadd.f32 %v230, %v231
  %v233 = vrot.slane %v232, 1
  %v234 = vadd.f32 %v232, %v233
  %v235 = vadd.f32 %v213, %v234
  %236 = vst [vmem:[#allocation2] sm:$0x1] %v235
  %v237 = vld [vmem:[#allocation3] sm:$0x1]
  %v238 = vmul.f32 %v119, %v119
  %v239 = vmul.f32 %v124, %v124
  %v240 = vmul.f32 %v129, %v129
  %v241 = vmul.f32 %v134, %v134
  %v242 = vmul.f32 %v139, %v139
  %v243 = vmul.f32 %v144, %v144
  %v244 = vmul.f32 %v149, %v149
  %v245 = vmul.f32 %v154, %v154
  %v246 = vmul.f32 %v159, %v159
  %v247 = vmul.f32 %v164, %v164
  %v248 = vmul.f32 %v169, %v169
  %v249 = vmul.f32 %v174, %v174
  %v250 = vmul.f32 %v179, %v179
  %v251 = vmul.f32 %v184, %v184
  %v252 = vmul.f32 %v189, %v189
  %v253 = vmul.f32 %v194, %v194
  %v254 = vadd.f32 %v238, %v239
  %v255 = vadd.f32 %v254, %v240
  %v256 = vadd.f32 %v255, %v241
  %v257 = vadd.f32 %v256, %v242
  %v258 = vadd.f32 %v257, %v243
  %v259 = vadd.f32 %v258, %v244
  %v260 = vadd.f32 %v259, %v245
  %v261 = vadd.f32 %v260, %v246
  %v262 = vadd.f32 %v261, %v247
  %v263 = vadd.f32 %v262, %v248
  %v264 = vadd.f32 %v263, %v249
  %v265 = vadd.f32 %v264, %v250
  %v266 = vadd.f32 %v265, %v251
  %v267 = vadd.f32 %v266, %v252
  %v268 = vadd.f32 %v267, %v253
  %v269 = vrot.slane %v268, 4
  %v270 = vadd.f32 %v268, %v269
  %v271 = vrot.slane %v270, 2
  %v272 = vadd.f32 %v270, %v271
  %v273 = vrot.slane %v272, 1
  %v274 = vadd.f32 %v272, %v273
  %v275 = vadd.f32 %v237, %v274
  %276 = vst [vmem:[#allocation3] sm:$0x1] %v275
  // Predicated region
  $region14: #{downsample_forward.2} parent=0 // pred_check
    %p277 = pneg %p14
  $region15: #{downsample_forward.2} parent=0 // pred_check_branch
    %279 = sbr.rel (%p277) target = $region17
  $region16: #{downsample_forward.2} parent=0 // pred_region
    %v280 = vld [vmem:[#allocation2] sm:$0x1]
    %281 = vst [vmem:[%s3] sm:$0x1] %v280
    %v282 = vld [vmem:[#allocation3] sm:$0x1]
    %283 = vst [vmem:[%s4] sm:$0x1] %v282
  $region17: #{downsample_forward.2} parent=0 // pred_fallthru
    _
  // Predicated region
  $region18: #{downsample_forward.2} parent=0 // pred_check
    _
  $region19: #{downsample_forward.2} parent=0 // pred_check_branch
    %285 = sbr.rel (0) target = $region21
  $region20: #{downsample_forward.2} parent=0 // pred_region
    _
  $region21: #{downsample_forward.2} parent=0 // pred_fallthru
    _
  // Predicated region
  $region22: #{downsample_forward.2} parent=0 // pred_check
    _
  $region23: #{downsample_forward.2} parent=0 // pred_check_branch
    %287 = sbr.rel (0) target = $region25
  $region24: #{downsample_forward.2} parent=0 // pred_region
    _
  $region25: #{downsample_forward.2} parent=0 // pred_fallthru
    _
  // Predicated region
  $region26: #{downsample_forward.2} parent=0 // pred_check
    _
  $region27: #{downsample_forward.2} parent=0 // pred_check_branch
    %289 = sbr.rel (0) target = $region29
  $region28: #{downsample_forward.2} parent=0 // pred_region
    _
  $region29: #{downsample_forward.2} parent=0 // pred_fallthru
    _
  // Predicated region
  $region30: #{downsample_forward.2} parent=0 // pred_check
    _
  $region31: #{downsample_forward.2} parent=0 // pred_check_branch
    %291 = sbr.rel (0) target = $region33
  $region32: #{downsample_forward.2} parent=0 // pred_region
    _
  $region33: #{downsample_forward.2} parent=0 // pred_fallthru
    _
  // Predicated region
  $region34: #{downsample_forward.2} parent=0 // pred_check
    _
  $region35: #{downsample_forward.2} parent=0 // pred_check_branch
    %293 = sbr.rel (0) target = $region37
  $region36: #{downsample_forward.2} parent=0 // pred_region
    _
  $region37: #{downsample_forward.2} parent=0 // pred_fallthru
    _
  // Predicated region
  $region38: #{downsample_forward.2} parent=0 // pred_check
    _
  $region39: #{downsample_forward.2} parent=0 // pred_check_branch
    %295 = sbr.rel (0) target = $region41
  $region40: #{downsample_forward.2} parent=0 // pred_region
    _
  $region41: #{downsample_forward.2} parent=0 // pred_fallthru
    _

</llo_original>
